<compile_context>
chip_gen: v5e
topology: v5e:2x2
jax: 0.10.0
libtpu: 0.0.40
codegen_flags: <defaults>
</compile_context>

<pallas_src>
import math
from functools import partial

import numpy as np
import jax
import jax.numpy as jnp
from jax.experimental import pallas as pl
from jax.experimental.pallas import tpu as pltpu

LMAX = 7
F_IN = 4
F_OUT = 8
N_GRID = 32          # number of kernel-grid points on S^2 (kernel_grid.shape[1])
BATCH = 2

S2_DIM = (LMAX + 1) ** 2                                   # 64  (dim of s2_irreps)
SO3_DIM = sum((2 * l + 1) ** 2 for l in range(LMAX + 1))   # 680 (dim of so3_irreps)
SO3_PAD = ((SO3_DIM + 127) // 128) * 128                   # 768 (lane-dense padding)
assert SO3_DIM <= SO3_PAD


# ---------------------------------------------------------------------------
# Host-side constants encoding the o3.Linear per-l block structure.
# For output index k = off_l + w*(2l+1) + m  (l = 0..lmax):
#   jsel[k]       = l*l + w   -> which psi column feeds output lane k
#   bselT[i, k]   = 1  iff  i == l*l + m   -> which x column feeds output lane k
# Padded lanes (k >= SO3_DIM) are zeroed via `valid`.
# ---------------------------------------------------------------------------
def _selection_tables(lmax, pad_dim):
    s2 = (lmax + 1) ** 2
    jsel = np.zeros((pad_dim,), np.int32)
    valid = np.zeros((pad_dim,), np.float32)
    bselT = np.zeros((s2, pad_dim), np.float32)
    k0 = 0
    for l in range(lmax + 1):
        d = 2 * l + 1
        for w in range(d):
            for m in range(d):
                k = k0 + w * d + m
                jsel[k] = l * l + w
                valid[k] = 1.0
                bselT[l * l + m, k] = 1.0
        k0 += d * d
    return jsel, valid, bselT


_JSEL, _VALID, _BSELT = _selection_tables(LMAX, SO3_PAD)


# ---------------------------------------------------------------------------
# Fused kernel: psiG matmul + x gather matmul + broadcast-MAC for all batches.
# ---------------------------------------------------------------------------
def _s2conv_kernel(x2d_ref, w2d_ref, yg_ref, bsel_ref, o_ref, *,
                   batch, f_in, f_out):
    # psiG[(x,y), k] = scale * psi[x, y, jsel[k]]   (mask + scale pre-folded into Y_g)
    psiG = jnp.dot(w2d_ref[...], yg_ref[...],
                   preferred_element_type=jnp.float32)          # (f_in*f_out, SO3_PAD)
    # xG[(b,x), k] = x[b, x, isel[k]]   -- one MXU gather for ALL batch elements
    xG = jnp.dot(x2d_ref[...], bsel_ref[...],
                 preferred_element_type=jnp.float32)            # (batch*f_in, SO3_PAD)

    for b in range(batch):                                      # static unroll (B = 2)
        # acc initialized from the xi = 0 term (saves a zero materialization + adds)
        acc = psiG[0:f_out, :] * xG[b * f_in:b * f_in + 1, :]
        for xi in range(1, f_in):                               # static unroll (f_in = 4)
            acc = acc + (psiG[xi * f_out:(xi + 1) * f_out, :]
                         * xG[b * f_in + xi:b * f_in + xi + 1, :])
        o_ref[b] = acc.astype(o_ref.dtype)                      # lane-dense (768) store


# ---------------------------------------------------------------------------
# Wrapper: single grid-less pallas_call, everything resident in VMEM.
# ---------------------------------------------------------------------------
@jax.jit
def s2conv_forward(x, w, Y):
    B, f_in, s2_dim = x.shape
    f_out = w.shape[1]
    n = Y.shape[0]
    scale = 1.0 / (math.sqrt(n) * math.sqrt(f_in))

    # Fold psi-side selection + scale into Y:  Y_g[n, k] = scale * Y[n, jsel[k]], 0 on pad.
    Yg = (Y[:, _JSEL] * scale) * jnp.asarray(_VALID)[None, :]   # (n, SO3_PAD)
    bselT = jnp.asarray(_BSELT)                                 # (s2, SO3_PAD) 0/1 gather
    w2d = w.reshape(f_in * f_out, n)                            # rows ordered (x, y)
    x2d = x.reshape(B * f_in, s2_dim)                           # rows ordered (b, x)

    vmem = pl.BlockSpec(memory_space=pltpu.MemorySpace.VMEM)
    flops = (2 * (f_in * f_out) * n * SO3_PAD            # psiG matmul
             + 2 * (B * f_in) * s2_dim * SO3_PAD         # xG matmul
             + 2 * B * f_in * f_out * SO3_PAD)           # broadcast-MAC
    bytes_accessed = 4 * (x2d.size + w2d.size + Yg.size + bselT.size
                          + B * f_out * SO3_PAD)

    out_pad = pl.pallas_call(
        partial(_s2conv_kernel, batch=B, f_in=f_in, f_out=f_out),
        out_shape=jax.ShapeDtypeStruct((B, f_out, SO3_PAD), jnp.float32),
        in_specs=[vmem, vmem, vmem, vmem],
        out_specs=vmem,
        cost_estimate=pl.CostEstimate(flops=flops, transcendentals=0,
                                      bytes_accessed=bytes_accessed),
    )(x2d, w2d, Yg, bselT)

    # Padded lanes are exactly zero; drop them outside the kernel (keeps in-kernel
    # stores and the writeback DMA 128-lane aligned).
    return out_pad[:, :, :SO3_DIM]


# ---------------------------------------------------------------------------
# Pure-JAX reference (mirrors the einsum + o3.Linear per-l block structure)
# ---------------------------------------------------------------------------
def s2conv_reference(x, w, Y):
    n = Y.shape[0]
    f_in = w.shape[0]
    psi = jnp.einsum('ni,xyn->xyi', Y, w) / math.sqrt(n)
    outs = []
    for l in range(LMAX + 1):
        d = 2 * l + 1
        sl = slice(l * l, l * l + d)
        w_l = psi[:, :, sl]                                  # (f_in, f_out, d)
        x_l = x[:, :, sl]                                    # (B,    f_in, d)
        o_l = jnp.einsum('xyw,zxi->zywi', w_l, x_l) / math.sqrt(f_in)
        outs.append(o_l.reshape(x.shape[0], w.shape[1], d * d))
    return jnp.concatenate(outs, axis=-1)


if __name__ == "__main__":
    key = jax.random.PRNGKey(0)
    kw, ky, kx = jax.random.split(key, 3)

    # parameter: w ~ randn(f_in, f_out, n_grid_points)   (as in the module's __init__)
    w = jax.random.normal(kw, (F_IN, F_OUT, N_GRID), dtype=jnp.float32)
    # buffer: Y has shape (n_grid_points, (lmax+1)^2)
    # TODO(synk): Y should be o3.spherical_harmonics_alpha_beta(range(lmax+1), *kernel_grid,
    #             normalization='component'); deterministic random placeholder here
    #             (buffer construction, not part of the forward hot path).
    Y = jax.random.normal(ky, (N_GRID, S2_DIM), dtype=jnp.float32)
    # input: (batch, f_in, s2_irreps.dim)
    x = jax.random.normal(kx, (BATCH, F_IN, S2_DIM), dtype=jnp.float32)

    out = jax.block_until_ready(s2conv_forward(x, w, Y))
    ref = jax.block_until_ready(s2conv_reference(x, w, Y))

    assert out.shape == (BATCH, F_OUT, SO3_DIM), out.shape
    np.testing.assert_allclose(np.asarray(out), np.asarray(ref), rtol=1e-2, atol=1e-2)
    print("KERNEL_OK")
</pallas_src>

<mosaic_0001>
module attributes {stable_mosaic.version = 11 : i64} {
  func.func @_s2conv_kernel(%arg0: memref<8x64xf32, #tpu.memory_space<vmem>>, %arg1: memref<32x32xf32, #tpu.memory_space<vmem>>, %arg2: memref<32x768xf32, #tpu.memory_space<vmem>>, %arg3: memref<64x768xf32, #tpu.memory_space<vmem>>, %arg4: memref<2x8x768xf32, #tpu.memory_space<vmem>>) attributes {dimension_semantics = [], scalar_prefetch = 0 : i64, scratch_operands = 0 : i64, tpu.core_type = #tpu.core_type<tc>} {
    %c0 = arith.constant 0 : index
    %c0_0 = arith.constant 0 : index
    %0 = vector.load %arg1[%c0, %c0_0] : memref<32x32xf32, #tpu.memory_space<vmem>>, vector<32x32xf32>
    %c0_1 = arith.constant 0 : index
    %c0_2 = arith.constant 0 : index
    %1 = vector.load %arg2[%c0_1, %c0_2] : memref<32x768xf32, #tpu.memory_space<vmem>>, vector<32x768xf32>
    %cst = arith.constant dense<0.000000e+00> : vector<32x768xf32>
    %2 = tpu.matmul %0, %1, %cst {dimension_numbers = #tpu.dot_dimension_numbers<[1], [0], [0], [1], [0, 0, 1, 1], [], []>} : vector<32x32xf32>, vector<32x768xf32>, vector<32x768xf32> -> vector<32x768xf32>
    %c0_3 = arith.constant 0 : index
    %c0_4 = arith.constant 0 : index
    %3 = vector.load %arg0[%c0_3, %c0_4] : memref<8x64xf32, #tpu.memory_space<vmem>>, vector<8x64xf32>
    %c0_5 = arith.constant 0 : index
    %c0_6 = arith.constant 0 : index
    %4 = vector.load %arg3[%c0_5, %c0_6] : memref<64x768xf32, #tpu.memory_space<vmem>>, vector<64x768xf32>
    %cst_7 = arith.constant dense<0.000000e+00> : vector<8x768xf32>
    %5 = tpu.matmul %3, %4, %cst_7 {dimension_numbers = #tpu.dot_dimension_numbers<[1], [0], [0], [1], [0, 0, 1, 1], [], []>} : vector<8x64xf32>, vector<64x768xf32>, vector<8x768xf32> -> vector<8x768xf32>
    %6 = vector.extract_strided_slice %2 {offsets = [0, 0], sizes = [8, 768], strides = [1, 1]} : vector<32x768xf32> to vector<8x768xf32>
    %7 = vector.extract_strided_slice %5 {offsets = [0, 0], sizes = [1, 768], strides = [1, 1]} : vector<8x768xf32> to vector<1x768xf32>
    %8 = vector.broadcast %7 : vector<1x768xf32> to vector<8x768xf32>
    %9 = arith.mulf %6, %8 : vector<8x768xf32>
    %10 = vector.extract_strided_slice %2 {offsets = [8, 0], sizes = [8, 768], strides = [1, 1]} : vector<32x768xf32> to vector<8x768xf32>
    %11 = vector.extract_strided_slice %5 {offsets = [1, 0], sizes = [1, 768], strides = [1, 1]} : vector<8x768xf32> to vector<1x768xf32>
    %12 = vector.broadcast %11 : vector<1x768xf32> to vector<8x768xf32>
    %13 = arith.mulf %10, %12 : vector<8x768xf32>
    %14 = arith.addf %9, %13 : vector<8x768xf32>
    %15 = vector.extract_strided_slice %2 {offsets = [16, 0], sizes = [8, 768], strides = [1, 1]} : vector<32x768xf32> to vector<8x768xf32>
    %16 = vector.extract_strided_slice %5 {offsets = [2, 0], sizes = [1, 768], strides = [1, 1]} : vector<8x768xf32> to vector<1x768xf32>
    %17 = vector.broadcast %16 : vector<1x768xf32> to vector<8x768xf32>
    %18 = arith.mulf %15, %17 : vector<8x768xf32>
    %19 = arith.addf %14, %18 : vector<8x768xf32>
    %20 = vector.extract_strided_slice %2 {offsets = [24, 0], sizes = [8, 768], strides = [1, 1]} : vector<32x768xf32> to vector<8x768xf32>
    %21 = vector.extract_strided_slice %5 {offsets = [3, 0], sizes = [1, 768], strides = [1, 1]} : vector<8x768xf32> to vector<1x768xf32>
    %22 = vector.broadcast %21 : vector<1x768xf32> to vector<8x768xf32>
    %23 = arith.mulf %20, %22 : vector<8x768xf32>
    %24 = arith.addf %19, %23 : vector<8x768xf32>
    %c0_8 = arith.constant 0 : index
    %c0_9 = arith.constant 0 : index
    %c0_10 = arith.constant 0 : index
    %25 = vector.load %arg4[%c0_8, %c0_9, %c0_10] : memref<2x8x768xf32, #tpu.memory_space<vmem>>, vector<1x8x768xf32>
    %26 = vector.shape_cast %25 : vector<1x8x768xf32> to vector<8x768xf32>
    %27 = vector.shape_cast %24 : vector<8x768xf32> to vector<1x8x768xf32>
    tpu.vector_store %arg4[%c0_8, %c0_9, %c0_10], %27 {strides = array<i32>} : memref<2x8x768xf32, #tpu.memory_space<vmem>>, vector<1x8x768xf32>,
    %28 = vector.extract_strided_slice %2 {offsets = [0, 0], sizes = [8, 768], strides = [1, 1]} : vector<32x768xf32> to vector<8x768xf32>
    %29 = vector.extract_strided_slice %5 {offsets = [4, 0], sizes = [1, 768], strides = [1, 1]} : vector<8x768xf32> to vector<1x768xf32>
    %30 = vector.broadcast %29 : vector<1x768xf32> to vector<8x768xf32>
    %31 = arith.mulf %28, %30 : vector<8x768xf32>
    %32 = vector.extract_strided_slice %2 {offsets = [8, 0], sizes = [8, 768], strides = [1, 1]} : vector<32x768xf32> to vector<8x768xf32>
    %33 = vector.extract_strided_slice %5 {offsets = [5, 0], sizes = [1, 768], strides = [1, 1]} : vector<8x768xf32> to vector<1x768xf32>
    %34 = vector.broadcast %33 : vector<1x768xf32> to vector<8x768xf32>
    %35 = arith.mulf %32, %34 : vector<8x768xf32>
    %36 = arith.addf %31, %35 : vector<8x768xf32>
    %37 = vector.extract_strided_slice %2 {offsets = [16, 0], sizes = [8, 768], strides = [1, 1]} : vector<32x768xf32> to vector<8x768xf32>
    %38 = vector.extract_strided_slice %5 {offsets = [6, 0], sizes = [1, 768], strides = [1, 1]} : vector<8x768xf32> to vector<1x768xf32>
    %39 = vector.broadcast %38 : vector<1x768xf32> to vector<8x768xf32>
    %40 = arith.mulf %37, %39 : vector<8x768xf32>
    %41 = arith.addf %36, %40 : vector<8x768xf32>
    %42 = vector.extract_strided_slice %2 {offsets = [24, 0], sizes = [8, 768], strides = [1, 1]} : vector<32x768xf32> to vector<8x768xf32>
    %43 = vector.extract_strided_slice %5 {offsets = [7, 0], sizes = [1, 768], strides = [1, 1]} : vector<8x768xf32> to vector<1x768xf32>
    %44 = vector.broadcast %43 : vector<1x768xf32> to vector<8x768xf32>
    %45 = arith.mulf %42, %44 : vector<8x768xf32>
    %46 = arith.addf %41, %45 : vector<8x768xf32>
    %c1 = arith.constant 1 : index
    %c0_11 = arith.constant 0 : index
    %c0_12 = arith.constant 0 : index
    %47 = vector.load %arg4[%c1, %c0_11, %c0_12] : memref<2x8x768xf32, #tpu.memory_space<vmem>>, vector<1x8x768xf32>
    %48 = vector.shape_cast %47 : vector<1x8x768xf32> to vector<8x768xf32>
    %49 = vector.shape_cast %46 : vector<8x768xf32> to vector<1x8x768xf32>
    tpu.vector_store %arg4[%c1, %c0_11, %c0_12], %49 {strides = array<i32>} : memref<2x8x768xf32, #tpu.memory_space<vmem>>, vector<1x8x768xf32>,
    return
  }
}

</mosaic_0001>

<llo_original>
// kernel: s2conv_forward.1
$region0: #{s2conv_forward.1}
  #allocation0 [shape = 'u32[]', space=smem, size = 0x4, offset = 0x4, fixed_abs, tag = 'smem constant byte address 0x4 - core index']
  #allocation1 [shape = 'u32[72,128]{1,0:T(1,128)}', space=vmem, size = 0x9000, scoped, tag = 'internal scratch']
  %s0 = inlined_call_operand.vmem [shape: f32[8,64], index: 0, kind: input, shape index: {}]
  %s1 = inlined_call_operand.vmem [shape: f32[32,32], index: 1, kind: input, shape index: {}]
  %s2 = inlined_call_operand.vmem [shape: f32[32,768], index: 2, kind: input, shape index: {}]
  %s3 = inlined_call_operand.vmem [shape: f32[64,768], index: 3, kind: input, shape index: {}]
  %s4 = inlined_call_operand.hbm [shape: f32[2,8,768], index: 4, kind: output, shape index: {}]
  %s5 = sld [smem:[#allocation0]]
  $region26: #{s2conv_forward.1} parent=0
    _
  %s7 = ssub.s32 1, %s5
  %s8 = scalar_select 0, %s7, %s5
  $region1: #{s2conv_forward.1} parent=0
    #allocation2 [shape = 'u8[49152]{0}', space=vmem, size = 0xc000, scoped, tag = 'output window, operand 0, single buffered']
    #allocation3 [shape = 's32[1]{0}', space=sflag, size = 0x4, scoped, tag = 'scoped memory for s2conv_forward.1']
    %9 = vsyncpa [#allocation3], 0
    // Predicated region
    $region2: #{s2conv_forward.1} parent=1 // pred_check
      _
    $region3: #{s2conv_forward.1} parent=1 // pred_check_branch
      %11 = sbr.rel (0) target = $region5
    $region4: #{s2conv_forward.1} parent=1 // pred_region
      _
    $region5: #{s2conv_forward.1} parent=1 // pred_fallthru
      _
    // Predicated region
    $region6: #{s2conv_forward.1} parent=1 // pred_check
      _
    $region7: #{s2conv_forward.1} parent=1 // pred_check_branch
      %13 = sbr.rel (0) target = $region9
    $region8: #{s2conv_forward.1} parent=1 // pred_region
      _
    $region9: #{s2conv_forward.1} parent=1 // pred_fallthru
      _
    // Predicated region
    $region10: #{s2conv_forward.1} parent=1 // pred_check
      _
    $region11: #{s2conv_forward.1} parent=1 // pred_check_branch
      %15 = sbr.rel (0) target = $region13
    $region12: #{s2conv_forward.1} parent=1 // pred_region
      _
    $region13: #{s2conv_forward.1} parent=1 // pred_fallthru
      _
    // Predicated region
    $region14: #{s2conv_forward.1} parent=1 // pred_check
      _
    $region15: #{s2conv_forward.1} parent=1 // pred_check_branch
      %17 = sbr.rel (0) target = $region17
    $region16: #{s2conv_forward.1} parent=1 // pred_region
      _
    $region17: #{s2conv_forward.1} parent=1 // pred_fallthru
      _
    %v18 = vld [vmem:[%s1] sm:$0xff]
    %v19 = vld [vmem:[%s1 + $0x8] sm:$0xff]
    %v20 = vld [vmem:[%s1 + $0x10] sm:$0xff]
    %v21 = vld [vmem:[%s1 + $0x18] sm:$0xff]
    %v22 = vld [vmem:[%s2] sm:$0xff]
    %v23 = vld [vmem:[%s2 + $0x8] sm:$0xff]
    %v24 = vld [vmem:[%s2 + $0x10] sm:$0xff]
    %v25 = vld [vmem:[%s2 + $0x18] sm:$0xff]
    %v26 = vld [vmem:[%s2 + $0x20] sm:$0xff]
    %v27 = vld [vmem:[%s2 + $0x28] sm:$0xff]
    %v28 = vld [vmem:[%s2 + $0x30] sm:$0xff]
    %v29 = vld [vmem:[%s2 + $0x38] sm:$0xff]
    %v30 = vld [vmem:[%s2 + $0x40] sm:$0xff]
    %v31 = vld [vmem:[%s2 + $0x48] sm:$0xff]
    %v32 = vld [vmem:[%s2 + $0x50] sm:$0xff]
    %v33 = vld [vmem:[%s2 + $0x58] sm:$0xff]
    %v34 = vld [vmem:[%s2 + $0x60] sm:$0xff]
    %v35 = vld [vmem:[%s2 + $0x68] sm:$0xff]
    %v36 = vld [vmem:[%s2 + $0x70] sm:$0xff]
    %v37 = vld [vmem:[%s2 + $0x78] sm:$0xff]
    %v38 = vld [vmem:[%s2 + $0x80] sm:$0xff]
    %v39 = vld [vmem:[%s2 + $0x88] sm:$0xff]
    %v40 = vld [vmem:[%s2 + $0x90] sm:$0xff]
    %v41 = vld [vmem:[%s2 + $0x98] sm:$0xff]
    %v42 = vld [vmem:[%s2 + $0xa0] sm:$0xff]
    %v43 = vld [vmem:[%s2 + $0xa8] sm:$0xff]
    %v44 = vld [vmem:[%s2 + $0xb0] sm:$0xff]
    %v45 = vld [vmem:[%s2 + $0xb8] sm:$0xff]
    %vm46 = vcmask 261120
    %v48 = vsel %vm46, %v18, 0
    %v51 = vsel %vm46, %v19, 0
    %v54 = vsel %vm46, %v20, 0
    %v57 = vsel %vm46, %v21, 0
    %59 = vmatpush.msra.mxu0 0.0
    %60 = vmatpush.msra.mxu0 0.0
    %61 = vmatpush.msra.mxu0 0.0
    %62 = vmatpush.msra.mxu0 0.0
    %63 = vmatpush.msra.mxu0 0.0
    %64 = vmatpush.msra.mxu0 0.0
    %65 = vmatpush.msra.mxu0 0.0
    %66 = vmatpush.msra.mxu0 0.0
    %67 = vmatpush.msra.mxu0 0.0
    %68 = vmatpush.msra.mxu0 0.0
    %69 = vmatpush.msra.mxu0 0.0
    %70 = vmatpush.msra.mxu0 0.0
    %71 = vmatpush.msra.mxu0 %v40
    %72 = vmatpush.msra.mxu0 %v34
    %73 = vmatpush.msra.mxu0 %v28
    %74 = vmatpush.msra.mxu0 %v22
    %75 = vmatmul.f32.gmra.mxu0 %v48
    %v76 = vpop.f32.mrf.mxu0
    %v77 = vadd.f32 0.0, %v76
    %78 = vmatmul.f32.gmra.mxu0 %v51
    %v79 = vpop.f32.mrf.mxu0
    %v80 = vadd.f32 0.0, %v79
    %81 = vmatmul.f32.gmra.mxu0 %v54
    %v82 = vpop.f32.mrf.mxu0
    %v83 = vadd.f32 0.0, %v82
    %84 = vmatmul.f32.gmra.mxu0 %v57
    %v85 = vpop.f32.mrf.mxu0
    %v86 = vadd.f32 0.0, %v85
    %87 = vdwg.mxu0
    %88 = vmatpush.msra.mxu0 0.0
    %89 = vmatpush.msra.mxu0 0.0
    %90 = vmatpush.msra.mxu0 0.0
    %91 = vmatpush.msra.mxu0 0.0
    %92 = vmatpush.msra.mxu0 0.0
    %93 = vmatpush.msra.mxu0 0.0
    %94 = vmatpush.msra.mxu0 0.0
    %95 = vmatpush.msra.mxu0 0.0
    %96 = vmatpush.msra.mxu0 0.0
    %97 = vmatpush.msra.mxu0 0.0
    %98 = vmatpush.msra.mxu0 0.0
    %99 = vmatpush.msra.mxu0 0.0
    %100 = vmatpush.msra.mxu0 %v41
    %101 = vmatpush.msra.mxu0 %v35
    %102 = vmatpush.msra.mxu0 %v29
    %103 = vmatpush.msra.mxu0 %v23
    %104 = vmatmul.f32.gmra.mxu0 %v48
    %v105 = vpop.f32.mrf.mxu0
    %v106 = vadd.f32 0.0, %v105
    %107 = vmatmul.f32.gmra.mxu0 %v51
    %v108 = vpop.f32.mrf.mxu0
    %v109 = vadd.f32 0.0, %v108
    %110 = vmatmul.f32.gmra.mxu0 %v54
    %v111 = vpop.f32.mrf.mxu0
    %v112 = vadd.f32 0.0, %v111
    %113 = vmatmul.f32.gmra.mxu0 %v57
    %v114 = vpop.f32.mrf.mxu0
    %v115 = vadd.f32 0.0, %v114
    %116 = vdwg.mxu0
    %117 = vmatpush.msra.mxu0 0.0
    %118 = vmatpush.msra.mxu0 0.0
    %119 = vmatpush.msra.mxu0 0.0
    %120 = vmatpush.msra.mxu0 0.0
    %121 = vmatpush.msra.mxu0 0.0
    %122 = vmatpush.msra.mxu0 0.0
    %123 = vmatpush.msra.mxu0 0.0
    %124 = vmatpush.msra.mxu0 0.0
    %125 = vmatpush.msra.mxu0 0.0
    %126 = vmatpush.msra.mxu0 0.0
    %127 = vmatpush.msra.mxu0 0.0
    %128 = vmatpush.msra.mxu0 0.0
    %129 = vmatpush.msra.mxu0 %v42
    %130 = vmatpush.msra.mxu0 %v36
    %131 = vmatpush.msra.mxu0 %v30
    %132 = vmatpush.msra.mxu0 %v24
    %133 = vmatmul.f32.gmra.mxu0 %v48
    %v134 = vpop.f32.mrf.mxu0
    %v135 = vadd.f32 0.0, %v134
    %136 = vmatmul.f32.gmra.mxu0 %v51
    %v137 = vpop.f32.mrf.mxu0
    %v138 = vadd.f32 0.0, %v137
    %139 = vmatmul.f32.gmra.mxu0 %v54
    %v140 = vpop.f32.mrf.mxu0
    %v141 = vadd.f32 0.0, %v140
    %142 = vmatmul.f32.gmra.mxu0 %v57
    %v143 = vpop.f32.mrf.mxu0
    %v144 = vadd.f32 0.0, %v143
    %145 = vdwg.mxu0
    %146 = vmatpush.msra.mxu0 0.0
    %147 = vmatpush.msra.mxu0 0.0
    %148 = vmatpush.msra.mxu0 0.0
    %149 = vmatpush.msra.mxu0 0.0
    %150 = vmatpush.msra.mxu0 0.0
    %151 = vmatpush.msra.mxu0 0.0
    %152 = vmatpush.msra.mxu0 0.0
    %153 = vmatpush.msra.mxu0 0.0
    %154 = vmatpush.msra.mxu0 0.0
    %155 = vmatpush.msra.mxu0 0.0
    %156 = vmatpush.msra.mxu0 0.0
    %157 = vmatpush.msra.mxu0 0.0
    %158 = vmatpush.msra.mxu0 %v43
    %159 = vmatpush.msra.mxu0 %v37
    %160 = vmatpush.msra.mxu0 %v31
    %161 = vmatpush.msra.mxu0 %v25
    %162 = vmatmul.f32.gmra.mxu0 %v48
    %v163 = vpop.f32.mrf.mxu0
    %v164 = vadd.f32 0.0, %v163
    %165 = vmatmul.f32.gmra.mxu0 %v51
    %v166 = vpop.f32.mrf.mxu0
    %v167 = vadd.f32 0.0, %v166
    %168 = vmatmul.f32.gmra.mxu0 %v54
    %v169 = vpop.f32.mrf.mxu0
    %v170 = vadd.f32 0.0, %v169
    %171 = vmatmul.f32.gmra.mxu0 %v57
    %v172 = vpop.f32.mrf.mxu0
    %v173 = vadd.f32 0.0, %v172
    %174 = vdwg.mxu0
    %175 = vmatpush.msra.mxu0 0.0
    %176 = vmatpush.msra.mxu0 0.0
    %177 = vmatpush.msra.mxu0 0.0
    %178 = vmatpush.msra.mxu0 0.0
    %179 = vmatpush.msra.mxu0 0.0
    %180 = vmatpush.msra.mxu0 0.0
    %181 = vmatpush.msra.mxu0 0.0
    %182 = vmatpush.msra.mxu0 0.0
    %183 = vmatpush.msra.mxu0 0.0
    %184 = vmatpush.msra.mxu0 0.0
    %185 = vmatpush.msra.mxu0 0.0
    %186 = vmatpush.msra.mxu0 0.0
    %187 = vmatpush.msra.mxu0 %v44
    %188 = vmatpush.msra.mxu0 %v38
    %189 = vmatpush.msra.mxu0 %v32
    %190 = vmatpush.msra.mxu0 %v26
    %191 = vmatmul.f32.gmra.mxu0 %v48
    %v192 = vpop.f32.mrf.mxu0
    %v193 = vadd.f32 0.0, %v192
    %194 = vmatmul.f32.gmra.mxu0 %v51
    %v195 = vpop.f32.mrf.mxu0
    %v196 = vadd.f32 0.0, %v195
    %197 = vmatmul.f32.gmra.mxu0 %v54
    %v198 = vpop.f32.mrf.mxu0
    %v199 = vadd.f32 0.0, %v198
    %200 = vmatmul.f32.gmra.mxu0 %v57
    %v201 = vpop.f32.mrf.mxu0
    %v202 = vadd.f32 0.0, %v201
    %203 = vdwg.mxu0
    %204 = vmatpush.msra.mxu0 0.0
    %205 = vmatpush.msra.mxu0 0.0
    %206 = vmatpush.msra.mxu0 0.0
    %207 = vmatpush.msra.mxu0 0.0
    %208 = vmatpush.msra.mxu0 0.0
    %209 = vmatpush.msra.mxu0 0.0
    %210 = vmatpush.msra.mxu0 0.0
    %211 = vmatpush.msra.mxu0 0.0
    %212 = vmatpush.msra.mxu0 0.0
    %213 = vmatpush.msra.mxu0 0.0
    %214 = vmatpush.msra.mxu0 0.0
    %215 = vmatpush.msra.mxu0 0.0
    %216 = vmatpush.msra.mxu0 %v45
    %217 = vmatpush.msra.mxu0 %v39
    %218 = vmatpush.msra.mxu0 %v33
    %219 = vmatpush.msra.mxu0 %v27
    %220 = vmatmul.f32.gmra.mxu0 %v48
    %v221 = vpop.f32.mrf.mxu0
    %v222 = vadd.f32 0.0, %v221
    %223 = vmatmul.f32.gmra.mxu0 %v51
    %v224 = vpop.f32.mrf.mxu0
    %v225 = vadd.f32 0.0, %v224
    %226 = vmatmul.f32.gmra.mxu0 %v54
    %v227 = vpop.f32.mrf.mxu0
    %v228 = vadd.f32 0.0, %v227
    %229 = vmatmul.f32.gmra.mxu0 %v57
    %v230 = vpop.f32.mrf.mxu0
    %v231 = vadd.f32 0.0, %v230
    %232 = vdwg.mxu0
    %v233 = vld [vmem:[%s0] sm:$0xff]
    %v234 = vld [vmem:[%s3] sm:$0xff]
    %v235 = vld [vmem:[%s3 + $0x8] sm:$0xff]
    %v236 = vld [vmem:[%s3 + $0x10] sm:$0xff]
    %v237 = vld [vmem:[%s3 + $0x18] sm:$0xff]
    %v238 = vld [vmem:[%s3 + $0x20] sm:$0xff]
    %v239 = vld [vmem:[%s3 + $0x28] sm:$0xff]
    %v240 = vld [vmem:[%s3 + $0x30] sm:$0xff]
    %v241 = vld [vmem:[%s3 + $0x38] sm:$0xff]
    %v242 = vld [vmem:[%s3 + $0x40] sm:$0xff]
    %v243 = vld [vmem:[%s3 + $0x48] sm:$0xff]
    %v244 = vld [vmem:[%s3 + $0x50] sm:$0xff]
    %v245 = vld [vmem:[%s3 + $0x58] sm:$0xff]
    %v246 = vld [vmem:[%s3 + $0x60] sm:$0xff]
    %v247 = vld [vmem:[%s3 + $0x68] sm:$0xff]
    %v248 = vld [vmem:[%s3 + $0x70] sm:$0xff]
    %v249 = vld [vmem:[%s3 + $0x78] sm:$0xff]
    %v250 = vld [vmem:[%s3 + $0x80] sm:$0xff]
    %v251 = vld [vmem:[%s3 + $0x88] sm:$0xff]
    %v252 = vld [vmem:[%s3 + $0x90] sm:$0xff]
    %v253 = vld [vmem:[%s3 + $0x98] sm:$0xff]
    %v254 = vld [vmem:[%s3 + $0xa0] sm:$0xff]
    %v255 = vld [vmem:[%s3 + $0xa8] sm:$0xff]
    %v256 = vld [vmem:[%s3 + $0xb0] sm:$0xff]
    %v257 = vld [vmem:[%s3 + $0xb8] sm:$0xff]
    %v258 = vld [vmem:[%s3 + $0xc0] sm:$0xff]
    %v259 = vld [vmem:[%s3 + $0xc8] sm:$0xff]
    %v260 = vld [vmem:[%s3 + $0xd0] sm:$0xff]
    %v261 = vld [vmem:[%s3 + $0xd8] sm:$0xff]
    %v262 = vld [vmem:[%s3 + $0xe0] sm:$0xff]
    %v263 = vld [vmem:[%s3 + $0xe8] sm:$0xff]
    %v264 = vld [vmem:[%s3 + $0xf0] sm:$0xff]
    %v265 = vld [vmem:[%s3 + $0xf8] sm:$0xff]
    %v266 = vld [vmem:[%s3 + $0x100] sm:$0xff]
    %v267 = vld [vmem:[%s3 + $0x108] sm:$0xff]
    %v268 = vld [vmem:[%s3 + $0x110] sm:$0xff]
    %v269 = vld [vmem:[%s3 + $0x118] sm:$0xff]
    %v270 = vld [vmem:[%s3 + $0x120] sm:$0xff]
    %v271 = vld [vmem:[%s3 + $0x128] sm:$0xff]
    %v272 = vld [vmem:[%s3 + $0x130] sm:$0xff]
    %v273 = vld [vmem:[%s3 + $0x138] sm:$0xff]
    %v274 = vld [vmem:[%s3 + $0x140] sm:$0xff]
    %v275 = vld [vmem:[%s3 + $0x148] sm:$0xff]
    %v276 = vld [vmem:[%s3 + $0x150] sm:$0xff]
    %v277 = vld [vmem:[%s3 + $0x158] sm:$0xff]
    %v278 = vld [vmem:[%s3 + $0x160] sm:$0xff]
    %v279 = vld [vmem:[%s3 + $0x168] sm:$0xff]
    %v280 = vld [vmem:[%s3 + $0x170] sm:$0xff]
    %v281 = vld [vmem:[%s3 + $0x178] sm:$0xff]
    %vm282 = vcmask 523264
    %v284 = vsel %vm282, %v233, 0
    %286 = vmatpush.msra.mxu0 0.0
    %287 = vmatpush.msra.mxu0 0.0
    %288 = vmatpush.msra.mxu0 0.0
    %289 = vmatpush.msra.mxu0 0.0
    %290 = vmatpush.msra.mxu0 0.0
    %291 = vmatpush.msra.mxu0 0.0
    %292 = vmatpush.msra.mxu0 0.0
    %293 = vmatpush.msra.mxu0 0.0
    %294 = vmatpush.msra.mxu0 %v276
    %295 = vmatpush.msra.mxu0 %v270
    %296 = vmatpush.msra.mxu0 %v264
    %297 = vmatpush.msra.mxu0 %v258
    %298 = vmatpush.msra.mxu0 %v252
    %299 = vmatpush.msra.mxu0 %v246
    %300 = vmatpush.msra.mxu0 %v240
    %301 = vmatpush.msra.mxu0 %v234
    %302 = vmatmul.f32.gmra.mxu0 %v284
    %v303 = vpop.f32.mrf.mxu0
    %v304 = vadd.f32 0.0, %v303
    %305 = vdwg.mxu0
    %306 = vmatpush.msra.mxu0 0.0
    %307 = vmatpush.msra.mxu0 0.0
    %308 = vmatpush.msra.mxu0 0.0
    %309 = vmatpush.msra.mxu0 0.0
    %310 = vmatpush.msra.mxu0 0.0
    %311 = vmatpush.msra.mxu0 0.0
    %312 = vmatpush.msra.mxu0 0.0
    %313 = vmatpush.msra.mxu0 0.0
    %314 = vmatpush.msra.mxu0 %v277
    %315 = vmatpush.msra.mxu0 %v271
    %316 = vmatpush.msra.mxu0 %v265
    %317 = vmatpush.msra.mxu0 %v259
    %318 = vmatpush.msra.mxu0 %v253
    %319 = vmatpush.msra.mxu0 %v247
    %320 = vmatpush.msra.mxu0 %v241
    %321 = vmatpush.msra.mxu0 %v235
    %322 = vmatmul.f32.gmra.mxu0 %v284
    %v323 = vpop.f32.mrf.mxu0
    %v324 = vadd.f32 0.0, %v323
    %325 = vdwg.mxu0
    %326 = vmatpush.msra.mxu0 0.0
    %327 = vmatpush.msra.mxu0 0.0
    %328 = vmatpush.msra.mxu0 0.0
    %329 = vmatpush.msra.mxu0 0.0
    %330 = vmatpush.msra.mxu0 0.0
    %331 = vmatpush.msra.mxu0 0.0
    %332 = vmatpush.msra.mxu0 0.0
    %333 = vmatpush.msra.mxu0 0.0
    %334 = vmatpush.msra.mxu0 %v278
    %335 = vmatpush.msra.mxu0 %v272
    %336 = vmatpush.msra.mxu0 %v266
    %337 = vmatpush.msra.mxu0 %v260
    %338 = vmatpush.msra.mxu0 %v254
    %339 = vmatpush.msra.mxu0 %v248
    %340 = vmatpush.msra.mxu0 %v242
    %341 = vmatpush.msra.mxu0 %v236
    %342 = vmatmul.f32.gmra.mxu0 %v284
    %v343 = vpop.f32.mrf.mxu0
    %v344 = vadd.f32 0.0, %v343
    %345 = vdwg.mxu0
    %346 = vmatpush.msra.mxu0 0.0
    %347 = vmatpush.msra.mxu0 0.0
    %348 = vmatpush.msra.mxu0 0.0
    %349 = vmatpush.msra.mxu0 0.0
    %350 = vmatpush.msra.mxu0 0.0
    %351 = vmatpush.msra.mxu0 0.0
    %352 = vmatpush.msra.mxu0 0.0
    %353 = vmatpush.msra.mxu0 0.0
    %354 = vmatpush.msra.mxu0 %v279
    %355 = vmatpush.msra.mxu0 %v273
    %356 = vmatpush.msra.mxu0 %v267
    %357 = vmatpush.msra.mxu0 %v261
    %358 = vmatpush.msra.mxu0 %v255
    %359 = vmatpush.msra.mxu0 %v249
    %360 = vmatpush.msra.mxu0 %v243
    %361 = vmatpush.msra.mxu0 %v237
    %362 = vmatmul.f32.gmra.mxu0 %v284
    %v363 = vpop.f32.mrf.mxu0
    %v364 = vadd.f32 0.0, %v363
    %365 = vdwg.mxu0
    %366 = vmatpush.msra.mxu0 0.0
    %367 = vmatpush.msra.mxu0 0.0
    %368 = vmatpush.msra.mxu0 0.0
    %369 = vmatpush.msra.mxu0 0.0
    %370 = vmatpush.msra.mxu0 0.0
    %371 = vmatpush.msra.mxu0 0.0
    %372 = vmatpush.msra.mxu0 0.0
    %373 = vmatpush.msra.mxu0 0.0
    %374 = vmatpush.msra.mxu0 %v280
    %375 = vmatpush.msra.mxu0 %v274
    %376 = vmatpush.msra.mxu0 %v268
    %377 = vmatpush.msra.mxu0 %v262
    %378 = vmatpush.msra.mxu0 %v256
    %379 = vmatpush.msra.mxu0 %v250
    %380 = vmatpush.msra.mxu0 %v244
    %381 = vmatpush.msra.mxu0 %v238
    %382 = vmatmul.f32.gmra.mxu0 %v284
    %v383 = vpop.f32.mrf.mxu0
    %v384 = vadd.f32 0.0, %v383
    %385 = vdwg.mxu0
    %386 = vmatpush.msra.mxu0 0.0
    %387 = vmatpush.msra.mxu0 0.0
    %388 = vmatpush.msra.mxu0 0.0
    %389 = vmatpush.msra.mxu0 0.0
    %390 = vmatpush.msra.mxu0 0.0
    %391 = vmatpush.msra.mxu0 0.0
    %392 = vmatpush.msra.mxu0 0.0
    %393 = vmatpush.msra.mxu0 0.0
    %394 = vmatpush.msra.mxu0 %v281
    %395 = vmatpush.msra.mxu0 %v275
    %396 = vmatpush.msra.mxu0 %v269
    %397 = vmatpush.msra.mxu0 %v263
    %398 = vmatpush.msra.mxu0 %v257
    %399 = vmatpush.msra.mxu0 %v251
    %400 = vmatpush.msra.mxu0 %v245
    %401 = vmatpush.msra.mxu0 %v239
    %402 = vmatmul.f32.gmra.mxu0 %v284
    %v403 = vpop.f32.mrf.mxu0
    %v404 = vadd.f32 0.0, %v403
    %405 = vdwg.mxu0
    %v406 = vperm.slane %v304, 0
    %v407 = vperm.slane %v324, 0
    %v408 = vperm.slane %v344, 0
    %v409 = vperm.slane %v364, 0
    %v410 = vperm.slane %v384, 0
    %v411 = vperm.slane %v404, 0
    %v412 = vmul.f32 %v77, %v406
    %v413 = vmul.f32 %v106, %v407
    %v414 = vmul.f32 %v135, %v408
    %v415 = vmul.f32 %v164, %v409
    %v416 = vmul.f32 %v193, %v410
    %v417 = vmul.f32 %v222, %v411
    %v418 = vperm.slane %v304, 1
    %v419 = vperm.slane %v324, 1
    %v420 = vperm.slane %v344, 1
    %v421 = vperm.slane %v364, 1
    %v422 = vperm.slane %v384, 1
    %v423 = vperm.slane %v404, 1
    %v424 = vmul.f32 %v80, %v418
    %v425 = vmul.f32 %v109, %v419
    %v426 = vmul.f32 %v138, %v420
    %v427 = vmul.f32 %v167, %v421
    %v428 = vmul.f32 %v196, %v422
    %v429 = vmul.f32 %v225, %v423
    %v430 = vadd.f32 %v412, %v424
    %v431 = vadd.f32 %v413, %v425
    %v432 = vadd.f32 %v414, %v426
    %v433 = vadd.f32 %v415, %v427
    %v434 = vadd.f32 %v416, %v428
    %v435 = vadd.f32 %v417, %v429
    %v436 = vperm.slane %v304, 2
    %v437 = vperm.slane %v324, 2
    %v438 = vperm.slane %v344, 2
    %v439 = vperm.slane %v364, 2
    %v440 = vperm.slane %v384, 2
    %v441 = vperm.slane %v404, 2
    %v442 = vmul.f32 %v83, %v436
    %v443 = vmul.f32 %v112, %v437
    %v444 = vmul.f32 %v141, %v438
    %v445 = vmul.f32 %v170, %v439
    %v446 = vmul.f32 %v199, %v440
    %v447 = vmul.f32 %v228, %v441
    %v448 = vadd.f32 %v430, %v442
    %v449 = vadd.f32 %v431, %v443
    %v450 = vadd.f32 %v432, %v444
    %v451 = vadd.f32 %v433, %v445
    %v452 = vadd.f32 %v434, %v446
    %v453 = vadd.f32 %v435, %v447
    %v454 = vperm.slane %v304, 3
    %v455 = vperm.slane %v324, 3
    %v456 = vperm.slane %v344, 3
    %v457 = vperm.slane %v364, 3
    %v458 = vperm.slane %v384, 3
    %v459 = vperm.slane %v404, 3
    %v460 = vmul.f32 %v86, %v454
    %v461 = vmul.f32 %v115, %v455
    %v462 = vmul.f32 %v144, %v456
    %v463 = vmul.f32 %v173, %v457
    %v464 = vmul.f32 %v202, %v458
    %v465 = vmul.f32 %v231, %v459
    %v466 = vadd.f32 %v448, %v460
    %v467 = vadd.f32 %v449, %v461
    %v468 = vadd.f32 %v450, %v462
    %v469 = vadd.f32 %v451, %v463
    %v470 = vadd.f32 %v452, %v464
    %v471 = vadd.f32 %v453, %v465
    %472 = vst [vmem:[#allocation2] sm:$0xff] %v466
    %473 = vst [vmem:[#allocation2 + $0x8] sm:$0xff] %v467
    %474 = vst [vmem:[#allocation2 + $0x10] sm:$0xff] %v468
    %475 = vst [vmem:[#allocation2 + $0x18] sm:$0xff] %v469
    %476 = vst [vmem:[#allocation2 + $0x20] sm:$0xff] %v470
    %477 = vst [vmem:[#allocation2 + $0x28] sm:$0xff] %v471
    %v478 = vperm.slane %v304, 4
    %v479 = vperm.slane %v324, 4
    %v480 = vperm.slane %v344, 4
    %v481 = vperm.slane %v364, 4
    %v482 = vperm.slane %v384, 4
    %v483 = vperm.slane %v404, 4
    %v484 = vmul.f32 %v77, %v478
    %v485 = vmul.f32 %v106, %v479
    %v486 = vmul.f32 %v135, %v480
    %v487 = vmul.f32 %v164, %v481
    %v488 = vmul.f32 %v193, %v482
    %v489 = vmul.f32 %v222, %v483
    %v490 = vperm.slane %v304, 5
    %v491 = vperm.slane %v324, 5
    %v492 = vperm.slane %v344, 5
    %v493 = vperm.slane %v364, 5
    %v494 = vperm.slane %v384, 5
    %v495 = vperm.slane %v404, 5
    %v496 = vmul.f32 %v80, %v490
    %v497 = vmul.f32 %v109, %v491
    %v498 = vmul.f32 %v138, %v492
    %v499 = vmul.f32 %v167, %v493
    %v500 = vmul.f32 %v196, %v494
    %v501 = vmul.f32 %v225, %v495
    %v502 = vadd.f32 %v484, %v496
    %v503 = vadd.f32 %v485, %v497
    %v504 = vadd.f32 %v486, %v498
    %v505 = vadd.f32 %v487, %v499
    %v506 = vadd.f32 %v488, %v500
    %v507 = vadd.f32 %v489, %v501
    %v508 = vperm.slane %v304, 6
    %v509 = vperm.slane %v324, 6
    %v510 = vperm.slane %v344, 6
    %v511 = vperm.slane %v364, 6
    %v512 = vperm.slane %v384, 6
    %v513 = vperm.slane %v404, 6
    %v514 = vmul.f32 %v83, %v508
    %v515 = vmul.f32 %v112, %v509
    %v516 = vmul.f32 %v141, %v510
    %v517 = vmul.f32 %v170, %v511
    %v518 = vmul.f32 %v199, %v512
    %v519 = vmul.f32 %v228, %v513
    %v520 = vadd.f32 %v502, %v514
    %v521 = vadd.f32 %v503, %v515
    %v522 = vadd.f32 %v504, %v516
    %v523 = vadd.f32 %v505, %v517
    %v524 = vadd.f32 %v506, %v518
    %v525 = vadd.f32 %v507, %v519
    %v526 = vperm.slane %v304, 7
    %v527 = vperm.slane %v324, 7
    %v528 = vperm.slane %v344, 7
    %v529 = vperm.slane %v364, 7
    %v530 = vperm.slane %v384, 7
    %v531 = vperm.slane %v404, 7
    %v532 = vmul.f32 %v86, %v526
    %v533 = vmul.f32 %v115, %v527
    %v534 = vmul.f32 %v144, %v528
    %v535 = vmul.f32 %v173, %v529
    %v536 = vmul.f32 %v202, %v530
    %v537 = vmul.f32 %v231, %v531
    %v538 = vadd.f32 %v520, %v532
    %v539 = vadd.f32 %v521, %v533
    %v540 = vadd.f32 %v522, %v534
    %v541 = vadd.f32 %v523, %v535
    %v542 = vadd.f32 %v524, %v536
    %v543 = vadd.f32 %v525, %v537
    %s544 = scalar_lea.vmem [#allocation2], 48
    %545 = vst [vmem:[%s544] sm:$0xff] %v538
    %546 = vst [vmem:[%s544 + $0x8] sm:$0xff] %v539
    %547 = vst [vmem:[%s544 + $0x10] sm:$0xff] %v540
    %548 = vst [vmem:[%s544 + $0x18] sm:$0xff] %v541
    %549 = vst [vmem:[%s544 + $0x20] sm:$0xff] %v542
    %550 = vst [vmem:[%s544 + $0x28] sm:$0xff] %v543
    // Predicated region
    $region18: #{s2conv_forward.1} parent=1 // pred_check
      _
    $region19: #{s2conv_forward.1} parent=1 // pred_check_branch
      %552 = sbr.rel (0) target = $region21
    $region20: #{s2conv_forward.1} parent=1 // pred_region
      %554 = vsyncadd [#allocation3], 0
      %s555 = sshll.u32 [#allocation2], 4
      %s556 = int_to_ptr.vmem [resolvable:$true] %s555
      %s557 = sshll.u32 %s4, 4
      %s558 = int_to_ptr.hbm [resolvable:$true] %s557
      %563 = dma.vmem_to_hbm [thread:$0]  %s556, 1536, %s558, [#allocation3], 768, 768, 48
    $region21: #{s2conv_forward.1} parent=1 // pred_fallthru
      _
    // Predicated region
    $region22: #{s2conv_forward.1} parent=1 // pred_check
      _
    $region23: #{s2conv_forward.1} parent=1 // pred_check_branch
      %565 = sbr.rel (0) target = $region25
    $region24: #{s2conv_forward.1} parent=1 // pred_region
      %567 = dma.done [#allocation3], 1536
    $region25: #{s2conv_forward.1} parent=1 // pred_fallthru
      _
    %568 = vsyncpa [#allocation3], 1

</llo_original>
